<compile_context>
chip_gen: v7x
topology: tpu7x:2x2x1
jax: 0.10.0
libtpu: 0.0.40
codegen_flags: <defaults>
</compile_context>

<pallas_src>
import functools

import jax
import jax.numpy as jnp
from jax.experimental import pallas as pl
from jax.experimental.pallas import tpu as pltpu


_INV_SQRT2 = 0.7071067811865476


def _gelu_exact(h):
    # torch.nn.GELU() default: 0.5 * x * (1 + erf(x / sqrt(2))).
    return 0.5 * h * (1.0 + jax.lax.erf(h * _INV_SQRT2))


def _ln_residual_store(y, x_ref, b2_ref, g_ref, beta_ref, o_ref, eps, inv_h):
    # dropout (inference) -> identity; bias + residual add; LayerNorm; store.
    y = y + b2_ref[...].astype(jnp.float32) + x_ref[...].astype(jnp.float32)
    mean = jnp.sum(y, axis=-1, keepdims=True) * inv_h
    meansq = jnp.sum(y * y, axis=-1, keepdims=True) * inv_h
    var = meansq - mean * mean
    yn = (y - mean) * jax.lax.rsqrt(var + eps)
    o_ref[...] = (yn * g_ref[...].astype(jnp.float32)
                  + beta_ref[...].astype(jnp.float32)).astype(o_ref.dtype)


def _ffn_kernel_single(x_ref, w1_ref, b1_ref, w2_ref, b2_ref, g_ref, beta_ref,
                       o_ref, *, eps, inv_h):
    """Whole inner dim in one tile: no reduction axis, no accumulator scratch."""
    h = jnp.dot(x_ref[...], w1_ref[...], preferred_element_type=jnp.float32)
    h = _gelu_exact(h + b1_ref[...].astype(jnp.float32))
    y = jnp.dot(h.astype(w2_ref.dtype), w2_ref[...],
                preferred_element_type=jnp.float32)
    _ln_residual_store(y, x_ref, b2_ref, g_ref, beta_ref, o_ref, eps, inv_h)


def _ffn_kernel_multi(x_ref, w1_ref, b1_ref, w2_ref, b2_ref, g_ref, beta_ref,
                      o_ref, acc_ref, *, eps, inv_h):
    """Inner dim split over a reduction grid axis; f32 VMEM accumulator."""
    k = pl.program_id(1)

    @pl.when(k == 0)
    def _():
        acc_ref[...] = jnp.zeros_like(acc_ref)

    # dense_1 partial over this I-chunk: [tm, H] @ [H, ti] + b1_chunk, then GELU.
    h = jnp.dot(x_ref[...], w1_ref[...], preferred_element_type=jnp.float32)
    h = _gelu_exact(h + b1_ref[...].astype(jnp.float32))

    # dense_2 partial: [tm, ti] @ [ti, H], accumulated in f32 VMEM scratch.
    acc_ref[...] += jnp.dot(h.astype(w2_ref.dtype), w2_ref[...],
                            preferred_element_type=jnp.float32)

    @pl.when(k == pl.num_programs(1) - 1)
    def _():
        _ln_residual_store(acc_ref[...], x_ref, b2_ref, g_ref, beta_ref,
                           o_ref, eps, inv_h)


def feed_forward(x, w1, b1, w2, b2, gamma, beta, *, eps=1e-12, tm=256, ti=512):
    """x: [B, S, H]; w1: [H, I]; w2: [I, H]; 1-D biases / LayerNorm params.

    Weights are [in, out] (transpose of torch.nn.Linear.weight).
    Dropout is inference-mode (identity).
    """
    B, S, H = x.shape
    I = w1.shape[1]
    M = B * S

    # Row tile: multiple of 8 sublanes, large enough to keep the MXU full.
    tm = max(8, min(tm, -(-M // 8) * 8))
    m_pad = -(-M // tm) * tm

    # Reduction tile over the inner dim: must divide I; lane-aligned when < I.
    ti = min(ti, I)
    if I % ti != 0 or (ti != I and ti % 128 != 0):
        cand = (ti // 128) * 128
        while cand >= 128 and I % cand != 0:
            cand -= 128
        ti = cand if cand >= 128 else I

    x2 = x.reshape(M, H)
    if m_pad != M:
        x2 = jnp.pad(x2, ((0, m_pad - M), (0, 0)))

    b1_2 = b1.reshape(1, I)
    b2_2 = b2.reshape(1, H)
    g_2 = gamma.reshape(1, H)
    be_2 = beta.reshape(1, H)

    grid_m = m_pad // tm
    grid_k = I // ti

    if grid_k == 1:
        kernel = functools.partial(_ffn_kernel_single, eps=eps, inv_h=1.0 / H)
        grid_spec = pltpu.PrefetchScalarGridSpec(
            num_scalar_prefetch=0,
            grid=(grid_m,),
            in_specs=[
                pl.BlockSpec((tm, H), lambda i: (i, 0)),  # x rows
                pl.BlockSpec((H, I), lambda i: (0, 0)),   # w1 (resident)
                pl.BlockSpec((1, I), lambda i: (0, 0)),   # b1
                pl.BlockSpec((I, H), lambda i: (0, 0)),   # w2 (resident)
                pl.BlockSpec((1, H), lambda i: (0, 0)),   # b2
                pl.BlockSpec((1, H), lambda i: (0, 0)),   # gamma
                pl.BlockSpec((1, H), lambda i: (0, 0)),   # beta
            ],
            out_specs=pl.BlockSpec((tm, H), lambda i: (i, 0)),
        )
        dims = ("parallel",)
    else:
        kernel = functools.partial(_ffn_kernel_multi, eps=eps, inv_h=1.0 / H)
        grid_spec = pltpu.PrefetchScalarGridSpec(
            num_scalar_prefetch=0,
            grid=(grid_m, grid_k),
            in_specs=[
                pl.BlockSpec((tm, H), lambda i, k: (i, 0)),  # x rows (resident over k)
                pl.BlockSpec((H, ti), lambda i, k: (0, k)),  # w1 I-chunk
                pl.BlockSpec((1, ti), lambda i, k: (0, k)),  # b1 I-chunk
                pl.BlockSpec((ti, H), lambda i, k: (k, 0)),  # w2 I-chunk
                pl.BlockSpec((1, H), lambda i, k: (0, 0)),   # b2
                pl.BlockSpec((1, H), lambda i, k: (0, 0)),   # gamma
                pl.BlockSpec((1, H), lambda i, k: (0, 0)),   # beta
            ],
            out_specs=pl.BlockSpec((tm, H), lambda i, k: (i, 0)),
            scratch_shapes=[pltpu.VMEM((tm, H), jnp.float32)],
        )
        dims = ("parallel", "arbitrary")

    out = pl.pallas_call(
        kernel,
        out_shape=jax.ShapeDtypeStruct((m_pad, H), x.dtype),
        grid_spec=grid_spec,
        compiler_params=pltpu.CompilerParams(dimension_semantics=dims),
    )(x2, w1, b1_2, w2, b2_2, g_2, be_2)

    if m_pad != M:
        out = out[:M]
    return out.reshape(B, S, H)


def _reference(x, w1, b1, w2, b2, gamma, beta, eps):
    hp = jax.lax.Precision.HIGHEST
    h = jnp.dot(x, w1, precision=hp) + b1
    h = 0.5 * h * (1.0 + jax.lax.erf(h * _INV_SQRT2))
    y = jnp.dot(h, w2, precision=hp) + b2
    y = y + x
    mean = jnp.mean(y, axis=-1, keepdims=True)
    var = jnp.mean((y - mean) ** 2, axis=-1, keepdims=True)
    return (y - mean) * jax.lax.rsqrt(var + eps) * gamma + beta


def _init_params(key, H, I):
    k1, k2, k3, k4 = jax.random.split(key, 4)
    w1 = jax.random.normal(k1, (H, I), dtype=jnp.float32) * 0.02
    b1 = jax.random.normal(k2, (I,), dtype=jnp.float32) * 0.02
    w2 = jax.random.normal(k3, (I, H), dtype=jnp.float32) * 0.02
    b2 = jax.random.normal(k4, (H,), dtype=jnp.float32) * 0.02
    gamma = jnp.ones((H,), dtype=jnp.float32)
    beta = jnp.zeros((H,), dtype=jnp.float32)
    return w1, b1, w2, b2, gamma, beta


if __name__ == "__main__":
    eps = 1e-12
    key = jax.random.PRNGKey(0)

    # Small shapes consistent with the module (single-pass path).
    B, S, H, I = 2, 8, 32, 64
    kx, kp, key = jax.random.split(key, 3)
    x = jax.random.normal(kx, (B, S, H), dtype=jnp.float32)
    params = _init_params(kp, H, I)
    out = jax.block_until_ready(feed_forward(x, *params, eps=eps))
    ref = _reference(x, *params, eps=eps)
    assert out.shape == (B, S, H)
    assert jnp.allclose(out, ref, atol=1e-4, rtol=1e-4)

    # Larger shapes exercising the reduction-axis + row-padding path.
    B2, S2, H2, I2 = 4, 96, 128, 1024
    kx2, kp2, key = jax.random.split(key, 3)
    x2 = jax.random.normal(kx2, (B2, S2, H2), dtype=jnp.float32)
    params2 = _init_params(kp2, H2, I2)
    out2 = jax.block_until_ready(feed_forward(x2, *params2, eps=eps))
    ref2 = _reference(x2, *params2, eps=eps)
    assert out2.shape == (B2, S2, H2)
    assert jnp.allclose(out2, ref2, atol=1e-3, rtol=1e-3)

    print("KERNEL_OK")
</pallas_src>

<mosaic_0001>
module attributes {stable_mosaic.version = 11 : i64} {
  func.func @_ffn_kernel_single(%arg0: i32, %arg1: memref<16x32xf32, #tpu.memory_space<vmem>>, %arg2: memref<32x64xf32, #tpu.memory_space<vmem>>, %arg3: memref<1x64xf32, #tpu.memory_space<vmem>>, %arg4: memref<64x32xf32, #tpu.memory_space<vmem>>, %arg5: memref<1x32xf32, #tpu.memory_space<vmem>>, %arg6: memref<1x32xf32, #tpu.memory_space<vmem>>, %arg7: memref<1x32xf32, #tpu.memory_space<vmem>>, %arg8: memref<16x32xf32, #tpu.memory_space<vmem>>) attributes {dimension_semantics = [#tpu.dimension_semantics<parallel>], iteration_bounds = array<i64: 1>, scalar_prefetch = 0 : i64, scratch_operands = 0 : i64, tpu.core_type = #tpu.core_type<tc>, window_params = [{transform_indices = @transform_0, window_bounds = array<i64: 16, 32>}, {pipeline_mode = #tpu.pipeline_mode<synchronous>, transform_indices = @transform_1, window_bounds = array<i64: 32, 64>}, {pipeline_mode = #tpu.pipeline_mode<synchronous>, transform_indices = @transform_2, window_bounds = array<i64: 1, 64>}, {pipeline_mode = #tpu.pipeline_mode<synchronous>, transform_indices = @transform_3, window_bounds = array<i64: 64, 32>}, {pipeline_mode = #tpu.pipeline_mode<synchronous>, transform_indices = @transform_4, window_bounds = array<i64: 1, 32>}, {pipeline_mode = #tpu.pipeline_mode<synchronous>, transform_indices = @transform_5, window_bounds = array<i64: 1, 32>}, {pipeline_mode = #tpu.pipeline_mode<synchronous>, transform_indices = @transform_6, window_bounds = array<i64: 1, 32>}, {transform_indices = @transform_7, window_bounds = array<i64: 16, 32>}]} {
    %c0 = arith.constant 0 : index
    %c0_0 = arith.constant 0 : index
    %0 = vector.load %arg1[%c0, %c0_0] : memref<16x32xf32, #tpu.memory_space<vmem>>, vector<16x32xf32>
    %c0_1 = arith.constant 0 : index
    %c0_2 = arith.constant 0 : index
    %1 = vector.load %arg2[%c0_1, %c0_2] : memref<32x64xf32, #tpu.memory_space<vmem>>, vector<32x64xf32>
    %cst = arith.constant dense<0.000000e+00> : vector<16x64xf32>
    %2 = tpu.matmul %0, %1, %cst {dimension_numbers = #tpu.dot_dimension_numbers<[1], [0], [0], [1], [0, 0, 1, 1], [], []>} : vector<16x32xf32>, vector<32x64xf32>, vector<16x64xf32> -> vector<16x64xf32>
    %c0_3 = arith.constant 0 : index
    %c0_4 = arith.constant 0 : index
    %3 = vector.load %arg3[%c0_3, %c0_4] : memref<1x64xf32, #tpu.memory_space<vmem>>, vector<1x64xf32>
    %4 = vector.broadcast %3 : vector<1x64xf32> to vector<16x64xf32>
    %5 = arith.addf %2, %4 : vector<16x64xf32>
    %cst_5 = arith.constant 5.000000e-01 : f32
    %6 = vector.broadcast %cst_5 : f32 to vector<16x64xf32>
    %7 = arith.mulf %6, %5 : vector<16x64xf32>
    %cst_6 = arith.constant 0.707106769 : f32
    %8 = vector.broadcast %cst_6 : f32 to vector<16x64xf32>
    %9 = arith.mulf %5, %8 : vector<16x64xf32>
    %10 = math.erf %9 : vector<16x64xf32>
    %cst_7 = arith.constant 1.000000e+00 : f32
    %11 = vector.broadcast %cst_7 : f32 to vector<16x64xf32>
    %12 = arith.addf %11, %10 : vector<16x64xf32>
    %13 = arith.mulf %7, %12 : vector<16x64xf32>
    %c0_8 = arith.constant 0 : index
    %c0_9 = arith.constant 0 : index
    %14 = vector.load %arg4[%c0_8, %c0_9] : memref<64x32xf32, #tpu.memory_space<vmem>>, vector<64x32xf32>
    %cst_10 = arith.constant dense<0.000000e+00> : vector<16x32xf32>
    %15 = tpu.matmul %13, %14, %cst_10 {dimension_numbers = #tpu.dot_dimension_numbers<[1], [0], [0], [1], [0, 0, 1, 1], [], []>} : vector<16x64xf32>, vector<64x32xf32>, vector<16x32xf32> -> vector<16x32xf32>
    %c0_11 = arith.constant 0 : index
    %c0_12 = arith.constant 0 : index
    %16 = vector.load %arg5[%c0_11, %c0_12] : memref<1x32xf32, #tpu.memory_space<vmem>>, vector<1x32xf32>
    %17 = vector.broadcast %16 : vector<1x32xf32> to vector<16x32xf32>
    %18 = arith.addf %15, %17 : vector<16x32xf32>
    %c0_13 = arith.constant 0 : index
    %c0_14 = arith.constant 0 : index
    %19 = vector.load %arg1[%c0_13, %c0_14] : memref<16x32xf32, #tpu.memory_space<vmem>>, vector<16x32xf32>
    %20 = arith.addf %18, %19 : vector<16x32xf32>
    %cst_15 = arith.constant dense<0.000000e+00> : vector<16xf32>
    %21 = vector.multi_reduction <add>, %20, %cst_15 [1] : vector<16x32xf32> to vector<16xf32>
    %22 = vector.shape_cast %21 : vector<16xf32> to vector<16x1xf32>
    %cst_16 = arith.constant 3.125000e-02 : f32
    %23 = vector.broadcast %cst_16 : f32 to vector<16x1xf32>
    %24 = arith.mulf %22, %23 : vector<16x1xf32>
    %25 = arith.mulf %20, %20 : vector<16x32xf32>
    %cst_17 = arith.constant dense<0.000000e+00> : vector<16xf32>
    %26 = vector.multi_reduction <add>, %25, %cst_17 [1] : vector<16x32xf32> to vector<16xf32>
    %27 = vector.shape_cast %26 : vector<16xf32> to vector<16x1xf32>
    %cst_18 = arith.constant 3.125000e-02 : f32
    %28 = vector.broadcast %cst_18 : f32 to vector<16x1xf32>
    %29 = arith.mulf %27, %28 : vector<16x1xf32>
    %30 = arith.mulf %24, %24 : vector<16x1xf32>
    %31 = arith.subf %29, %30 : vector<16x1xf32>
    %32 = vector.broadcast %24 : vector<16x1xf32> to vector<16x32xf32>
    %33 = arith.subf %20, %32 : vector<16x32xf32>
    %cst_19 = arith.constant 9.99999996E-13 : f32
    %34 = vector.broadcast %cst_19 : f32 to vector<16x1xf32>
    %35 = arith.addf %31, %34 : vector<16x1xf32>
    %36 = math.rsqrt %35 : vector<16x1xf32>
    %37 = vector.broadcast %36 : vector<16x1xf32> to vector<16x32xf32>
    %38 = arith.mulf %33, %37 : vector<16x32xf32>
    %c0_20 = arith.constant 0 : index
    %c0_21 = arith.constant 0 : index
    %39 = vector.load %arg6[%c0_20, %c0_21] : memref<1x32xf32, #tpu.memory_space<vmem>>, vector<1x32xf32>
    %40 = vector.broadcast %39 : vector<1x32xf32> to vector<16x32xf32>
    %41 = arith.mulf %38, %40 : vector<16x32xf32>
    %c0_22 = arith.constant 0 : index
    %c0_23 = arith.constant 0 : index
    %42 = vector.load %arg7[%c0_22, %c0_23] : memref<1x32xf32, #tpu.memory_space<vmem>>, vector<1x32xf32>
    %43 = vector.broadcast %42 : vector<1x32xf32> to vector<16x32xf32>
    %44 = arith.addf %41, %43 : vector<16x32xf32>
    %c0_24 = arith.constant 0 : index
    %c0_25 = arith.constant 0 : index
    %45 = vector.load %arg8[%c0_24, %c0_25] : memref<16x32xf32, #tpu.memory_space<vmem>>, vector<16x32xf32>
    tpu.vector_store %arg8[%c0_24, %c0_25], %44 {strides = array<i32>} : memref<16x32xf32, #tpu.memory_space<vmem>>, vector<16x32xf32>,
    return
  }
  func.func @transform_0(%arg0: i32) -> (i32, i32) {
    %c0_i32 = arith.constant 0 : i32
    %c0_i32_0 = arith.constant 0 : i32
    return %arg0, %c0_i32 : i32, i32
  }
  func.func @transform_1(%arg0: i32) -> (i32, i32) {
    %c0_i32 = arith.constant 0 : i32
    %c0_i32_0 = arith.constant 0 : i32
    %c0_i32_1 = arith.constant 0 : i32
    return %c0_i32, %c0_i32_0 : i32, i32
  }
  func.func @transform_2(%arg0: i32) -> (i32, i32) {
    %c0_i32 = arith.constant 0 : i32
    %c0_i32_0 = arith.constant 0 : i32
    %c0_i32_1 = arith.constant 0 : i32
    return %c0_i32, %c0_i32_0 : i32, i32
  }
  func.func @transform_3(%arg0: i32) -> (i32, i32) {
    %c0_i32 = arith.constant 0 : i32
    %c0_i32_0 = arith.constant 0 : i32
    %c0_i32_1 = arith.constant 0 : i32
    return %c0_i32, %c0_i32_0 : i32, i32
  }
  func.func @transform_4(%arg0: i32) -> (i32, i32) {
    %c0_i32 = arith.constant 0 : i32
    %c0_i32_0 = arith.constant 0 : i32
    %c0_i32_1 = arith.constant 0 : i32
    return %c0_i32, %c0_i32_0 : i32, i32
  }
  func.func @transform_5(%arg0: i32) -> (i32, i32) {
    %c0_i32 = arith.constant 0 : i32
    %c0_i32_0 = arith.constant 0 : i32
    %c0_i32_1 = arith.constant 0 : i32
    return %c0_i32, %c0_i32_0 : i32, i32
  }
  func.func @transform_6(%arg0: i32) -> (i32, i32) {
    %c0_i32 = arith.constant 0 : i32
    %c0_i32_0 = arith.constant 0 : i32
    %c0_i32_1 = arith.constant 0 : i32
    return %c0_i32, %c0_i32_0 : i32, i32
  }
  func.func @transform_7(%arg0: i32) -> (i32, i32) {
    %c0_i32 = arith.constant 0 : i32
    %c0_i32_0 = arith.constant 0 : i32
    return %arg0, %c0_i32 : i32, i32
  }
}

</mosaic_0001>

<llo_original>
// kernel: tpu_custom_call.1
$region0: #{tpu_custom_call.1}
  #allocation0 [shape = 'u32[]', space=smem, size = 0x4, offset = 0x4, fixed_abs, tag = 'smem constant byte address 0x4 - core index']
  #allocation1 [shape = 'u32[144,128]{1,0:T(1,128)}', space=vmem, size = 0x12000, scoped, tag = 'internal scratch']
  %s0 = inlined_call_operand.vmem [shape: f32[16,32], index: 0, kind: input, shape index: {}]
  %s1 = inlined_call_operand.vmem [shape: f32[32,64], index: 1, kind: input, shape index: {}]
  %s2 = inlined_call_operand.vmem [shape: f32[1,64], index: 2, kind: input, shape index: {}]
  %s3 = inlined_call_operand.vmem [shape: f32[64,32], index: 3, kind: input, shape index: {}]
  %s4 = inlined_call_operand.vmem [shape: f32[1,32], index: 4, kind: input, shape index: {}]
  %s5 = inlined_call_operand.vmem [shape: f32[1,32], index: 5, kind: input, shape index: {}]
  %s6 = inlined_call_operand.vmem [shape: f32[1,32], index: 6, kind: input, shape index: {}]
  %s7 = inlined_call_operand.hbm [shape: f32[16,32], index: 7, kind: output, shape index: {}]
  %s8 = sld [smem:[#allocation0]]
  $region38: #{tpu_custom_call.1} parent=0
    _
  %s10 = ssub.s32 1, %s8
  %s11 = scalar_select 0, %s10, %s8
  $region1: #{tpu_custom_call.1} parent=0
    #allocation2 [shape = 'u8[8192]{0}', space=vmem, size = 0x2000, scoped, tag = 'output window, operand 0, single buffered']
    #allocation3 [shape = 's32[1]{0}', space=sflag, size = 0x4, scoped, tag = 'scoped memory for tpu_custom_call.1']
    %12 = vsyncpa [#allocation3], 0
    // Predicated region
    $region2: #{tpu_custom_call.1} parent=1 // pred_check
      _
    $region3: #{tpu_custom_call.1} parent=1 // pred_check_branch
      %14 = sbr.rel (0) target = $region5
    $region4: #{tpu_custom_call.1} parent=1 // pred_region
      _
    $region5: #{tpu_custom_call.1} parent=1 // pred_fallthru
      _
    // Predicated region
    $region6: #{tpu_custom_call.1} parent=1 // pred_check
      _
    $region7: #{tpu_custom_call.1} parent=1 // pred_check_branch
      %16 = sbr.rel (0) target = $region9
    $region8: #{tpu_custom_call.1} parent=1 // pred_region
      _
    $region9: #{tpu_custom_call.1} parent=1 // pred_fallthru
      _
    // Predicated region
    $region10: #{tpu_custom_call.1} parent=1 // pred_check
      _
    $region11: #{tpu_custom_call.1} parent=1 // pred_check_branch
      %18 = sbr.rel (0) target = $region13
    $region12: #{tpu_custom_call.1} parent=1 // pred_region
      _
    $region13: #{tpu_custom_call.1} parent=1 // pred_fallthru
      _
    // Predicated region
    $region14: #{tpu_custom_call.1} parent=1 // pred_check
      _
    $region15: #{tpu_custom_call.1} parent=1 // pred_check_branch
      %20 = sbr.rel (0) target = $region17
    $region16: #{tpu_custom_call.1} parent=1 // pred_region
      _
    $region17: #{tpu_custom_call.1} parent=1 // pred_fallthru
      _
    // Predicated region
    $region18: #{tpu_custom_call.1} parent=1 // pred_check
      _
    $region19: #{tpu_custom_call.1} parent=1 // pred_check_branch
      %22 = sbr.rel (0) target = $region21
    $region20: #{tpu_custom_call.1} parent=1 // pred_region
      _
    $region21: #{tpu_custom_call.1} parent=1 // pred_fallthru
      _
    // Predicated region
    $region22: #{tpu_custom_call.1} parent=1 // pred_check
      _
    $region23: #{tpu_custom_call.1} parent=1 // pred_check_branch
      %24 = sbr.rel (0) target = $region25
    $region24: #{tpu_custom_call.1} parent=1 // pred_region
      _
    $region25: #{tpu_custom_call.1} parent=1 // pred_fallthru
      _
    // Predicated region
    $region26: #{tpu_custom_call.1} parent=1 // pred_check
      _
    $region27: #{tpu_custom_call.1} parent=1 // pred_check_branch
      %26 = sbr.rel (0) target = $region29
    $region28: #{tpu_custom_call.1} parent=1 // pred_region
      _
    $region29: #{tpu_custom_call.1} parent=1 // pred_fallthru
      _
    %v27 = vld [vmem:[%s0] sm:$0xff]
    %v28 = vld [vmem:[%s0 + $0x8] sm:$0xff]
    %v29 = vld [vmem:[%s1] sm:$0xff]
    %v30 = vld [vmem:[%s1 + $0x8] sm:$0xff]
    %v31 = vld [vmem:[%s1 + $0x10] sm:$0xff]
    %v32 = vld [vmem:[%s1 + $0x18] sm:$0xff]
    %v33 = vld [vmem:[%s2] sm:$0x1]
    %v35 = vlaneseq
    %v36 = vshrl.u32 %v35, 7
    %v37 = vsub.s32 0, %v36
    %v38 = vrot.slane %v33, %v37
    %vm40 = vcmask 261120
    %v42 = vsel %vm40, %v27, 0
    %v45 = vsel %vm40, %v28, 0
    %47 = vmatprep.subr.mxu0 0.0
    %48 = vmatpush1.msra.mxu0 %v29
    %49 = vmatprep.subr.mxu0 0.0
    %50 = vmatpush1.msra.mxu0 %v30
    %51 = vmatprep.subr.mxu0 0.0
    %52 = vmatpush1.msra.mxu0 %v31
    %53 = vmatprep.subr.mxu0 0.0
    %54 = vmatpush1.msra.mxu0 %v32
    %55 = vmatprep.subr.mxu0 0.0
    %56 = vmatpush1.msra.mxu0 0.0
    %57 = vmatprep.subr.mxu0 0.0
    %58 = vmatpush1.msra.mxu0 0.0
    %59 = vmatprep.subr.mxu0 0.0
    %60 = vmatpush1.msra.mxu0 0.0
    %61 = vmatprep.subr.mxu0 0.0
    %62 = vmatpush1.msra.mxu0 0.0
    %63 = vmatprep.subr.mxu0 0.0
    %64 = vmatpush1.msra.mxu0 0.0
    %65 = vmatprep.subr.mxu0 0.0
    %66 = vmatpush1.msra.mxu0 0.0
    %67 = vmatprep.subr.mxu0 0.0
    %68 = vmatpush1.msra.mxu0 0.0
    %69 = vmatprep.subr.mxu0 0.0
    %70 = vmatpush1.msra.mxu0 0.0
    %71 = vmatprep.subr.mxu0 0.0
    %72 = vmatpush1.msra.mxu0 0.0
    %73 = vmatprep.subr.mxu0 0.0
    %74 = vmatpush1.msra.mxu0 0.0
    %75 = vmatprep.subr.mxu0 0.0
    %76 = vmatpush1.msra.mxu0 0.0
    %77 = vmatprep.subr.mxu0 0.0
    %78 = vmatpush1.msra.mxu0 0.0
    %79 = vmatprep.subr.mxu0 0.0
    %80 = vmatpush1.msra.mxu0 0.0
    %81 = vmatprep.subr.mxu0 0.0
    %82 = vmatpush1.msra.mxu0 0.0
    %83 = vmatprep.subr.mxu0 0.0
    %84 = vmatpush1.msra.mxu0 0.0
    %85 = vmatprep.subr.mxu0 0.0
    %86 = vmatpush1.msra.mxu0 0.0
    %87 = vmatprep.subr.mxu0 0.0
    %88 = vmatpush1.msra.mxu0 0.0
    %89 = vmatprep.subr.mxu0 0.0
    %90 = vmatpush1.msra.mxu0 0.0
    %91 = vmatprep.subr.mxu0 0.0
    %92 = vmatpush1.msra.mxu0 0.0
    %93 = vmatprep.subr.mxu0 0.0
    %94 = vmatpush1.msra.mxu0 0.0
    %95 = vmatprep.subr.mxu0 0.0
    %96 = vmatpush1.msra.mxu0 0.0
    %97 = vmatprep.subr.mxu0 0.0
    %98 = vmatpush1.msra.mxu0 0.0
    %99 = vmatprep.subr.mxu0 0.0
    %100 = vmatpush1.msra.mxu0 0.0
    %101 = vmatprep.subr.mxu0 0.0
    %102 = vmatpush1.msra.mxu0 0.0
    %103 = vmatprep.subr.mxu0 0.0
    %104 = vmatpush1.msra.mxu0 0.0
    %105 = vmatprep.subr.mxu0 0.0
    %106 = vmatpush1.msra.mxu0 0.0
    %107 = vmatprep.subr.mxu0 0.0
    %108 = vmatpush1.msra.mxu0 0.0
    %109 = vmatprep.subr.mxu0 0.0
    %110 = vmatpush1.msra.mxu0 0.0
    %111 = vmatprep.mubr.f32.mxu0 0.0
    %112 = vmatmul.mubr.f32.gmra.mrb[0].mxu0 %v42
    %v113 = vpop.f32.mrb[0].mxu0
    %v114 = vadd.f32 %v38, %v113
    %v115 = vpop.f32.mrb[0].mxu0
    %116 = vmatprep.mubr.f32.mxu0 0.0
    %117 = vmatmul.mubr.f32.gmra.mrb[0].mxu0 %v45
    %v118 = vpop.f32.mrb[0].mxu0
    %v119 = vadd.f32 %v38, %v118
    %v120 = vpop.f32.mrb[0].mxu0
    %121 = vdwg.mxu0
    %v122 = vmul.f32 %v114, 0.5
    %v123 = vmul.f32 %v119, 0.5
    %v124 = vmul.f32 %v114, 0.70710677
    %v125 = vmul.f32 %v119, 0.70710677
    %v126 = verf.f32.pop %v124
    %v127 = verf.f32.pop %v125
    %v128 = vadd.f32 %v126, 1.0
    %v129 = vadd.f32 %v127, 1.0
    %v130 = vmul.f32 %v122, %v128
    %v131 = vmul.f32 %v123, %v129
    %v132 = vld [vmem:[%s3] sm:$0xff]
    %v133 = vld [vmem:[%s3 + $0x8] sm:$0xff]
    %v134 = vld [vmem:[%s3 + $0x10] sm:$0xff]
    %v135 = vld [vmem:[%s3 + $0x18] sm:$0xff]
    %v136 = vld [vmem:[%s3 + $0x20] sm:$0xff]
    %v137 = vld [vmem:[%s3 + $0x28] sm:$0xff]
    %v138 = vld [vmem:[%s3 + $0x30] sm:$0xff]
    %v139 = vld [vmem:[%s3 + $0x38] sm:$0xff]
    %v140 = vld [vmem:[%s4] sm:$0x1]
    %v142 = vlaneseq
    %v143 = vshrl.u32 %v142, 7
    %v144 = vsub.s32 0, %v143
    %v145 = vrot.slane %v140, %v144
    %vm147 = vcmask 523264
    %v149 = vsel %vm147, %v130, 0
    %v152 = vsel %vm147, %v131, 0
    %154 = vmatprep.subr.mxu0 0.0
    %155 = vmatpush1.msra.mxu0 %v132
    %156 = vmatprep.subr.mxu0 0.0
    %157 = vmatpush1.msra.mxu0 %v133
    %158 = vmatprep.subr.mxu0 0.0
    %159 = vmatpush1.msra.mxu0 %v134
    %160 = vmatprep.subr.mxu0 0.0
    %161 = vmatpush1.msra.mxu0 %v135
    %162 = vmatprep.subr.mxu0 0.0
    %163 = vmatpush1.msra.mxu0 %v136
    %164 = vmatprep.subr.mxu0 0.0
    %165 = vmatpush1.msra.mxu0 %v137
    %166 = vmatprep.subr.mxu0 0.0
    %167 = vmatpush1.msra.mxu0 %v138
    %168 = vmatprep.subr.mxu0 0.0
    %169 = vmatpush1.msra.mxu0 %v139
    %170 = vmatprep.subr.mxu0 0.0
    %171 = vmatpush1.msra.mxu0 0.0
    %172 = vmatprep.subr.mxu0 0.0
    %173 = vmatpush1.msra.mxu0 0.0
    %174 = vmatprep.subr.mxu0 0.0
    %175 = vmatpush1.msra.mxu0 0.0
    %176 = vmatprep.subr.mxu0 0.0
    %177 = vmatpush1.msra.mxu0 0.0
    %178 = vmatprep.subr.mxu0 0.0
    %179 = vmatpush1.msra.mxu0 0.0
    %180 = vmatprep.subr.mxu0 0.0
    %181 = vmatpush1.msra.mxu0 0.0
    %182 = vmatprep.subr.mxu0 0.0
    %183 = vmatpush1.msra.mxu0 0.0
    %184 = vmatprep.subr.mxu0 0.0
    %185 = vmatpush1.msra.mxu0 0.0
    %186 = vmatprep.subr.mxu0 0.0
    %187 = vmatpush1.msra.mxu0 0.0
    %188 = vmatprep.subr.mxu0 0.0
    %189 = vmatpush1.msra.mxu0 0.0
    %190 = vmatprep.subr.mxu0 0.0
    %191 = vmatpush1.msra.mxu0 0.0
    %192 = vmatprep.subr.mxu0 0.0
    %193 = vmatpush1.msra.mxu0 0.0
    %194 = vmatprep.subr.mxu0 0.0
    %195 = vmatpush1.msra.mxu0 0.0
    %196 = vmatprep.subr.mxu0 0.0
    %197 = vmatpush1.msra.mxu0 0.0
    %198 = vmatprep.subr.mxu0 0.0
    %199 = vmatpush1.msra.mxu0 0.0
    %200 = vmatprep.subr.mxu0 0.0
    %201 = vmatpush1.msra.mxu0 0.0
    %202 = vmatprep.subr.mxu0 0.0
    %203 = vmatpush1.msra.mxu0 0.0
    %204 = vmatprep.subr.mxu0 0.0
    %205 = vmatpush1.msra.mxu0 0.0
    %206 = vmatprep.subr.mxu0 0.0
    %207 = vmatpush1.msra.mxu0 0.0
    %208 = vmatprep.subr.mxu0 0.0
    %209 = vmatpush1.msra.mxu0 0.0
    %210 = vmatprep.subr.mxu0 0.0
    %211 = vmatpush1.msra.mxu0 0.0
    %212 = vmatprep.subr.mxu0 0.0
    %213 = vmatpush1.msra.mxu0 0.0
    %214 = vmatprep.subr.mxu0 0.0
    %215 = vmatpush1.msra.mxu0 0.0
    %216 = vmatprep.subr.mxu0 0.0
    %217 = vmatpush1.msra.mxu0 0.0
    %218 = vmatprep.mubr.f32.mxu0 0.0
    %219 = vmatmul.mubr.f32.gmra.mrb[0].mxu0 %v149
    %v220 = vpop.f32.mrb[0].mxu0
    %v221 = vadd.f32 %v145, %v220
    %v222 = vpop.f32.mrb[0].mxu0
    %223 = vmatprep.mubr.f32.mxu0 0.0
    %224 = vmatmul.mubr.f32.gmra.mrb[0].mxu0 %v152
    %v225 = vpop.f32.mrb[0].mxu0
    %v226 = vadd.f32 %v145, %v225
    %v227 = vpop.f32.mrb[0].mxu0
    %228 = vdwg.mxu0
    %v229 = vadd.f32 %v221, %v27
    %v230 = vadd.f32 %v226, %v28
    %v231 = vsel %vm40, %v229, 0.0
    %232 = vadd.xlane.f32.xlu0 %v231
    %v233 = vpop.xlane.xlu0 %232
    %v234 = vsel %vm40, %v230, 0.0
    %235 = vadd.xlane.f32.xlu0 %v234
    %v236 = vpop.xlane.xlu0 %235
    %v237 = vmul.f32 %v233, 0.03125
    %v238 = vmul.f32 %v236, 0.03125
    %v239 = vmul.f32 %v229, %v229
    %v240 = vmul.f32 %v230, %v230
    %v241 = vsel %vm40, %v239, 0.0
    %242 = vadd.xlane.f32.xlu0 %v241
    %v243 = vpop.xlane.xlu0 %242
    %v244 = vsel %vm40, %v240, 0.0
    %245 = vadd.xlane.f32.xlu0 %v244
    %v246 = vpop.xlane.xlu0 %245
    %v247 = vmul.f32 %v243, 0.03125
    %v248 = vmul.f32 %v246, 0.03125
    %v249 = vmul.f32 %v237, %v237
    %v250 = vmul.f32 %v238, %v238
    %v251 = vsub.f32 %v247, %v249
    %v252 = vsub.f32 %v248, %v250
    %v253 = vsub.f32 %v229, %v237
    %v254 = vsub.f32 %v230, %v238
    %v255 = vadd.f32 %v251, 1e-12
    %v256 = vadd.f32 %v252, 1e-12
    %v257 = vrsqrt.pop %v255
    %v258 = vrsqrt.pop %v256
    %v259 = vmul.f32 %v253, %v257
    %v260 = vmul.f32 %v254, %v258
    %v261 = vld [vmem:[%s5] sm:$0x1]
    %v263 = vlaneseq
    %v264 = vshrl.u32 %v263, 7
    %v265 = vsub.s32 0, %v264
    %v266 = vrot.slane %v261, %v265
    %v268 = vmul.f32 %v259, %v266
    %v269 = vmul.f32 %v260, %v266
    %v270 = vld [vmem:[%s6] sm:$0x1]
    %v272 = vlaneseq
    %v273 = vshrl.u32 %v272, 7
    %v274 = vsub.s32 0, %v273
    %v275 = vrot.slane %v270, %v274
    %v277 = vadd.f32 %v268, %v275
    %v278 = vadd.f32 %v269, %v275
    %279 = vst.msk [vmem:[#allocation2] sm:$0xff] %vm40, %v277
    %280 = vst.msk [vmem:[#allocation2 + $0x8] sm:$0xff] %vm40, %v278
    // Predicated region
    $region30: #{tpu_custom_call.1} parent=1 // pred_check
      _
    $region31: #{tpu_custom_call.1} parent=1 // pred_check_branch
      %282 = sbr.rel (0) target = $region33
    $region32: #{tpu_custom_call.1} parent=1 // pred_region
      %s284 = ssub.s32 256, 256
      %285 = vsyncadd [#allocation3], %s284
      %s286 = sshll.u32 [#allocation2], 4
      %s287 = int_to_ptr.vmem [resolvable:$true] %s286
      %292 = dma.vmem_to_hbm [thread:$0]  %s287, 256, %s7, [#allocation3], 128, 128, 8
    $region33: #{tpu_custom_call.1} parent=1 // pred_fallthru
      _
    // Predicated region
    $region34: #{tpu_custom_call.1} parent=1 // pred_check
      _
    $region35: #{tpu_custom_call.1} parent=1 // pred_check_branch
      %294 = sbr.rel (0) target = $region37
    $region36: #{tpu_custom_call.1} parent=1 // pred_region
      %295 = dma.done [#allocation3], 256
    $region37: #{tpu_custom_call.1} parent=1 // pred_fallthru
      _
    %296 = vsyncpa [#allocation3], 1

</llo_original>
